<compile_context>
chip_gen: v7x
topology: tpu7x:2x2x1
jax: 0.10.0
libtpu: 0.0.40
codegen_flags: <defaults>
</compile_context>

<pallas_src>
import functools

import jax
import jax.numpy as jnp
import numpy as np
from jax.experimental import pallas as pl
from jax.experimental.pallas import tpu as pltpu


# ----------------------------- Pallas kernel ------------------------------- #
def simmim_kernel(xp_ref, m_ref, w_ref, b_ref, r_ref, sel_ref, xrec_ref, lsum_ref):
    """Per grid step: one (tn2, 2P)x(2P, 2S3) bf16 MXU matmul on two-patch-packed rows,
    mask-token row select, and masked-|x - x_rec| per-lane partial-sum accumulation."""
    i = pl.program_id(1)                               # "arbitrary" accumulation axis

    @pl.when(i == 0)
    def _init():
        lsum_ref[...] = jnp.zeros_like(lsum_ref)

    # fused (patch-embed o 1x1x1 conv): lane-dense bf16 matmul, f32 accumulation.
    y = jnp.dot(xp_ref[...], w_ref[...],
                preferred_element_type=jnp.float32) + b_ref[...]   # (tn2, 2*S3) f32

    # per-patch mask expanded to lane halves via the precomputed 0/1 selector
    # (replaces the loop-invariant iota+cmp that was regenerated every step).
    m2 = m_ref[...].astype(jnp.float32)                # (tn2, 2)
    m0 = m2[:, 0:1]
    m1 = m2[:, 1:2]
    m_full = m0 + (m1 - m0) * sel_ref[...]             # (tn2, 2*S3)

    xrec = jnp.where(m_full > 0.0, r_ref[...], y)      # f32 value used for the loss
    xrec_ref[...] = xrec.astype(xrec_ref.dtype)        # lane-dense bf16 store

    # masked L1 partial sums folded to an (8, 128) vreg-shaped resident accumulator.
    # Elementwise math in f32 (v5e VPU has no bf16); valid because P == S3 (asserted).
    xp_f = xp_ref[...].astype(jnp.float32)
    part = jnp.abs(xp_f - xrec) * m_full
    lsum_ref[...] += jnp.sum(part.reshape(-1, 8, part.shape[1]), axis=0)


# ------------------------------- glue -------------------------------------- #
def _cdiv(a, b):
    return (a + b - 1) // b


def _round_up(a, m):
    return _cdiv(a, m) * m


def extract_patches(x, patch):
    """NCDHW volume -> (B*L, C*p0*p1*p2) patches, voxel order (c, dz, dy, dx)."""
    B, C, D, H, W = x.shape
    p0, p1, p2 = patch
    Dp, Hp, Wp = D // p0, H // p1, W // p2
    xp = x.reshape(B, C, Dp, p0, Hp, p1, Wp, p2)
    xp = xp.transpose(0, 2, 4, 6, 1, 3, 5, 7)          # (B,Dp,Hp,Wp,C,p0,p1,p2)
    return xp.reshape(B * Dp * Hp * Wp, C * p0 * p1 * p2), (B, Dp, Hp, Wp)


def patches_to_volume(p, B, Dp, Hp, Wp, s):
    """(B*L, s^3) patches (order dz,dy,dx) -> (B, 1, Dp*s, Hp*s, Wp*s)."""
    y = p.reshape(B, Dp, Hp, Wp, s, s, s)
    y = y.transpose(0, 1, 4, 2, 5, 3, 6)               # (B,Dp,s,Hp,s,Wp,s)
    return y.reshape(B, Dp * s, Hp * s, Wp * s)[:, None]


@functools.partial(jax.jit,
                   static_argnames=("patch", "stride", "in_chans", "tile", "stream_dtype"))
def simmim_forward(x, mask, params, *, patch, stride, in_chans,
                   tile=4096, stream_dtype=jnp.bfloat16):
    we, be, mtok, wc, bc = params
    p0, p1, p2 = patch
    P = in_chans * p0 * p1 * p2
    S3 = stride ** 3
    # in-kernel |xp - xrec| assumes patch voxel order == pixel-shuffle channel order
    assert in_chans == 1 and (p0, p1, p2) == (stride, stride, stride), \
        "fused loss path requires in_chans == 1 and patch == (stride,)*3"

    # Fuse encoder-linear + conv1 (both linear; the mask-token substitution selects
    # whole rows, so it commutes with the 1x1x1 conv).
    w_f = we @ wc                                      # (P, S3)
    b_f = be @ wc + bc                                 # (1, S3)
    r_m = mtok @ wc + bc                               # (1, S3) recon of a masked patch

    xp, (B, Dp, Hp, Wp) = extract_patches(x, patch)    # (N, P) f32
    N = xp.shape[0]
    mflat = mask.reshape(N).astype(jnp.float32)

    # ---- tiling over two-patch-packed rows ---------------------------------
    N2 = _cdiv(N, 2)
    split = 2 if N2 >= 16 else 1          # unconditional leading "parallel" axis
                                          # (v7x megacore; harmless loop on 1-TC chips)
    tile = _round_up(max(8, min(int(tile), 8192)), 8)  # 8192 cap keeps the double-
                                                       # buffered set < ~16 MiB (v7x safe)
    rows_per_core = _cdiv(N2, split)
    tn2 = min(tile, _round_up(rows_per_core, 8))
    steps = _cdiv(rows_per_core, tn2)
    N2p = split * steps * tn2
    Np = 2 * N2p
    if Np > N:                            # zero-pad: mask=0 rows add nothing to the loss
        xp = jnp.concatenate([xp, jnp.zeros((Np - N, P), xp.dtype)], axis=0)
        mflat = jnp.concatenate([mflat, jnp.zeros((Np - N,), mflat.dtype)], axis=0)

    # Pack two patches per row -> 128-lane-dense loads / matmul / stores.
    xp2 = xp.reshape(N2p, 2 * P).astype(stream_dtype)
    m2 = mflat.reshape(N2p, 2).astype(stream_dtype)

    w_blk = jnp.zeros((2 * P, 2 * S3), jnp.float32)
    w_blk = w_blk.at[:P, :S3].set(w_f).at[P:, S3:].set(w_f).astype(stream_dtype)
    b_blk = jnp.concatenate([b_f, b_f], axis=1)                 # (1, 2*S3) f32
    r_blk = jnp.concatenate([r_m, r_m], axis=1)                 # (1, 2*S3) f32
    sel = jnp.concatenate([jnp.zeros((1, S3), jnp.float32),
                           jnp.ones((1, S3), jnp.float32)], axis=1)   # lane-half selector

    # ---- VMEM budget (double-buffered tiles, incl. lane-padded mask tile) ---
    sbytes = jnp.dtype(stream_dtype).itemsize
    tile_bytes = tn2 * (2 * P + 2 * S3 + 128) * sbytes          # xp + xrec + padded mask
    const_bytes = (2 * P) * (2 * S3) * sbytes + 3 * 8 * 128 * 4  # weight + 3 small rows
    need = 2 * (tile_bytes + const_bytes + 8 * 2 * S3 * 4)
    vmem_limit = int(min(max(2 * need + (4 << 20), 16 << 20), 40 << 20))

    grid_spec = pltpu.PrefetchScalarGridSpec(
        num_scalar_prefetch=0,
        grid=(split, steps),
        in_specs=[
            pl.BlockSpec((tn2, 2 * P), lambda c, i: (c * steps + i, 0)),    # packed patches
            pl.BlockSpec((tn2, 2), lambda c, i: (c * steps + i, 0)),        # packed mask
            pl.BlockSpec((2 * P, 2 * S3), lambda c, i: (0, 0)),             # fused weight
            pl.BlockSpec((1, 2 * S3), lambda c, i: (0, 0)),                 # fused bias
            pl.BlockSpec((1, 2 * S3), lambda c, i: (0, 0)),                 # masked-row recon
            pl.BlockSpec((1, 2 * S3), lambda c, i: (0, 0)),                 # lane-half selector
        ],
        out_specs=[
            pl.BlockSpec((tn2, 2 * S3), lambda c, i: (c * steps + i, 0)),   # packed x_rec
            pl.BlockSpec((8, 2 * S3), lambda c, i: (c, 0)),                 # per-core loss sums
        ],
    )

    xrec2, lsum = pl.pallas_call(
        simmim_kernel,
        grid_spec=grid_spec,
        out_shape=(
            jax.ShapeDtypeStruct((N2p, 2 * S3), stream_dtype),
            jax.ShapeDtypeStruct((split * 8, 2 * S3), jnp.float32),
        ),
        compiler_params=pltpu.CompilerParams(
            dimension_semantics=("parallel", "arbitrary"),
            vmem_limit_bytes=vmem_limit),
    )(xp2, m2, w_blk, b_blk, r_blk, sel)

    # Relayout stays bf16 (half the transpose bytes); upcast only at the end.
    xrec_p = xrec2.reshape(Np, S3)[:N]
    x_rec = patches_to_volume(xrec_p, B, Dp, Hp, Wp, stride).astype(jnp.float32)

    mask_up = jnp.repeat(jnp.repeat(jnp.repeat(mask, p0, 1), p1, 2), p2, 3)
    mask_up = mask_up[:, None].astype(jnp.float32)              # (B,1,D,H,W), returned

    denom = jnp.sum(mask) * float(p0 * p1 * p2)                 # == sum(mask_up), cheaper
    loss = jnp.sum(lsum) / (denom + 1e-5) / in_chans
    return loss, x_rec, mask_up


# ----------------------- pure-JAX reference (mirrors PyTorch) --------------- #
def pixel_shuffle_3d(x, u):
    B, C, Dp, Hp, Wp = x.shape
    ch = C // (u ** 3)
    v = x.reshape(B, ch, u, u, u, Dp, Hp, Wp)
    v = v.transpose(0, 1, 5, 2, 6, 3, 7, 4)
    return v.reshape(B, ch, Dp * u, Hp * u, Wp * u)


def reference_forward(x, mask, params, *, patch, stride, in_chans):
    we, be, mtok, wc, bc = params
    xp, (B, Dp, Hp, Wp) = extract_patches(x, patch)
    z = xp @ we + be
    z = jnp.where(mask.reshape(-1, 1) > 0, mtok, z)                 # (N, Cf)
    z = z.reshape(B, Dp, Hp, Wp, -1).transpose(0, 4, 1, 2, 3)       # NCDHW features
    y = jnp.einsum("bcdhw,co->bodhw", z, wc) + bc[0][None, :, None, None, None]
    x_rec = pixel_shuffle_3d(y, stride)
    m = jnp.repeat(jnp.repeat(jnp.repeat(mask, patch[0], 1), patch[1], 2),
                   patch[2], 3)[:, None].astype(jnp.float32)
    loss_recon = jnp.abs(x - x_rec)
    loss = (loss_recon * m).sum() / (m.sum() + 1e-5) / in_chans
    return loss, x_rec, m


# --------------------------------- main ------------------------------------ #
if __name__ == "__main__":
    B, in_chans, D, H, W = 2, 1, 16, 16, 16
    patch = (4, 4, 4)
    stride = 4                       # encoder_stride == patch_size for this encoder
    num_features = 64
    Cf = 2 * num_features            # conv1 in_channels = 2 * num_features
    P = in_chans * patch[0] * patch[1] * patch[2]
    S3 = stride ** 3                 # conv1 out_channels = encoder_stride**3 * 1

    key = jax.random.PRNGKey(0)
    kx, km, k1, k2, k3, k4, k5 = jax.random.split(key, 7)
    x = jax.random.normal(kx, (B, in_chans, D, H, W), jnp.float32)
    mask = (jax.random.uniform(km, (B, D // patch[0], H // patch[1], W // patch[2]))
            > 0.5).astype(jnp.float32)

    params = (
        jax.random.normal(k1, (P, Cf), jnp.float32) * 0.02,    # patch-embed weight
        jax.random.normal(k2, (1, Cf), jnp.float32) * 0.02,    # patch-embed bias
        jax.random.normal(k3, (1, Cf), jnp.float32) * 0.02,    # mask token
        jax.random.normal(k4, (Cf, S3), jnp.float32) * 0.02,   # conv1 weight (1x1x1)
        jax.random.normal(k5, (1, S3), jnp.float32) * 0.02,    # conv1 bias
    )

    loss, x_rec, mask_up = simmim_forward(
        x, mask, params, patch=patch, stride=stride, in_chans=in_chans)
    jax.block_until_ready((loss, x_rec, mask_up))

    ref_loss, ref_rec, ref_mask = reference_forward(
        x, mask, params, patch=patch, stride=stride, in_chans=in_chans)

    # bf16 streaming path -> looser tolerances vs the f32 reference.
    np.testing.assert_allclose(np.asarray(loss), np.asarray(ref_loss),
                               rtol=1e-2, atol=1e-4)
    np.testing.assert_allclose(np.asarray(x_rec), np.asarray(ref_rec),
                               rtol=5e-2, atol=5e-3)
    np.testing.assert_allclose(np.asarray(mask_up), np.asarray(ref_mask), rtol=0, atol=0)

    print("KERNEL_OK")
</pallas_src>

<mosaic_0001>
module attributes {stable_mosaic.version = 11 : i64} {
  func.func @simmim_kernel(%arg0: i32, %arg1: i32, %arg2: memref<32x128xbf16, #tpu.memory_space<vmem>>, %arg3: memref<32x2xbf16, #tpu.memory_space<vmem>>, %arg4: memref<128x128xbf16, #tpu.memory_space<vmem>>, %arg5: memref<1x128xf32, #tpu.memory_space<vmem>>, %arg6: memref<1x128xf32, #tpu.memory_space<vmem>>, %arg7: memref<1x128xf32, #tpu.memory_space<vmem>>, %arg8: memref<32x128xbf16, #tpu.memory_space<vmem>>, %arg9: memref<8x128xf32, #tpu.memory_space<vmem>>) attributes {dimension_semantics = [#tpu.dimension_semantics<parallel>, #tpu.dimension_semantics<arbitrary>], iteration_bounds = array<i64: 2, 1>, scalar_prefetch = 0 : i64, scratch_operands = 0 : i64, tpu.core_type = #tpu.core_type<tc>, window_params = [{transform_indices = @transform_0, window_bounds = array<i64: 32, 128>}, {transform_indices = @transform_1, window_bounds = array<i64: 32, 2>}, {pipeline_mode = #tpu.pipeline_mode<synchronous>, transform_indices = @transform_2, window_bounds = array<i64: 128, 128>}, {pipeline_mode = #tpu.pipeline_mode<synchronous>, transform_indices = @transform_3, window_bounds = array<i64: 1, 128>}, {pipeline_mode = #tpu.pipeline_mode<synchronous>, transform_indices = @transform_4, window_bounds = array<i64: 1, 128>}, {pipeline_mode = #tpu.pipeline_mode<synchronous>, transform_indices = @transform_5, window_bounds = array<i64: 1, 128>}, {transform_indices = @transform_6, window_bounds = array<i64: 32, 128>}, {transform_indices = @transform_7, window_bounds = array<i64: 8, 128>}]} {
    %c0_i32 = arith.constant 0 : i32
    %0 = arith.cmpi eq, %arg1, %c0_i32 : i32
    %1 = arith.extui %0 : i1 to i32
    %c0_i32_0 = arith.constant 0 : i32
    %2 = arith.cmpi ne, %1, %c0_i32_0 : i32
    scf.if %2 {
      %cst_22 = arith.constant 0.000000e+00 : f32
      %38 = vector.broadcast %cst_22 : f32 to vector<8x128xf32>
      %c0_23 = arith.constant 0 : index
      %c0_24 = arith.constant 0 : index
      %39 = vector.load %arg9[%c0_23, %c0_24] : memref<8x128xf32, #tpu.memory_space<vmem>>, vector<8x128xf32>
      tpu.vector_store %arg9[%c0_23, %c0_24], %38 {strides = array<i32>} : memref<8x128xf32, #tpu.memory_space<vmem>>, vector<8x128xf32>,
    } else {
    }
    %c0 = arith.constant 0 : index
    %c0_1 = arith.constant 0 : index
    %3 = vector.load %arg2[%c0, %c0_1] : memref<32x128xbf16, #tpu.memory_space<vmem>>, vector<32x128xbf16>
    %c0_2 = arith.constant 0 : index
    %c0_3 = arith.constant 0 : index
    %4 = vector.load %arg4[%c0_2, %c0_3] : memref<128x128xbf16, #tpu.memory_space<vmem>>, vector<128x128xbf16>
    %cst = arith.constant dense<0.000000e+00> : vector<32x128xf32>
    %5 = tpu.matmul %3, %4, %cst {dimension_numbers = #tpu.dot_dimension_numbers<[1], [0], [0], [1], [0, 0, 1, 1], [], []>} : vector<32x128xbf16>, vector<128x128xbf16>, vector<32x128xf32> -> vector<32x128xf32>
    %c0_4 = arith.constant 0 : index
    %c0_5 = arith.constant 0 : index
    %6 = vector.load %arg5[%c0_4, %c0_5] : memref<1x128xf32, #tpu.memory_space<vmem>>, vector<1x128xf32>
    %7 = vector.broadcast %6 : vector<1x128xf32> to vector<32x128xf32>
    %8 = arith.addf %5, %7 : vector<32x128xf32>
    %c0_6 = arith.constant 0 : index
    %c0_7 = arith.constant 0 : index
    %9 = vector.load %arg3[%c0_6, %c0_7] : memref<32x2xbf16, #tpu.memory_space<vmem>>, vector<32x2xbf16>
    %10 = arith.extf %9 : vector<32x2xbf16> to vector<32x2xf32>
    %11 = vector.extract_strided_slice %10 {offsets = [0, 0], sizes = [32, 1], strides = [1, 1]} : vector<32x2xf32> to vector<32x1xf32>
    %12 = vector.extract_strided_slice %10 {offsets = [0, 1], sizes = [32, 1], strides = [1, 1]} : vector<32x2xf32> to vector<32x1xf32>
    %13 = arith.subf %12, %11 : vector<32x1xf32>
    %c0_8 = arith.constant 0 : index
    %c0_9 = arith.constant 0 : index
    %14 = vector.load %arg7[%c0_8, %c0_9] : memref<1x128xf32, #tpu.memory_space<vmem>>, vector<1x128xf32>
    %15 = vector.broadcast %13 : vector<32x1xf32> to vector<32x128xf32>
    %16 = vector.broadcast %14 : vector<1x128xf32> to vector<32x128xf32>
    %17 = arith.mulf %15, %16 : vector<32x128xf32>
    %18 = vector.broadcast %11 : vector<32x1xf32> to vector<32x128xf32>
    %19 = arith.addf %18, %17 : vector<32x128xf32>
    %cst_10 = arith.constant 0.000000e+00 : f32
    %20 = vector.broadcast %cst_10 : f32 to vector<32x128xf32>
    %21 = arith.cmpf ogt, %19, %20 : vector<32x128xf32>
    %c0_11 = arith.constant 0 : index
    %c0_12 = arith.constant 0 : index
    %22 = vector.load %arg6[%c0_11, %c0_12] : memref<1x128xf32, #tpu.memory_space<vmem>>, vector<1x128xf32>
    %23 = vector.shape_cast %22 : vector<1x128xf32> to vector<1x128xf32>
    %24 = vector.broadcast %23 : vector<1x128xf32> to vector<32x128xf32>
    %25 = arith.select %21, %24, %8 : vector<32x128xi1>, vector<32x128xf32>
    %26 = arith.truncf %25 : vector<32x128xf32> to vector<32x128xbf16>
    %c0_13 = arith.constant 0 : index
    %c0_14 = arith.constant 0 : index
    %27 = vector.load %arg8[%c0_13, %c0_14] : memref<32x128xbf16, #tpu.memory_space<vmem>>, vector<32x128xbf16>
    tpu.vector_store %arg8[%c0_13, %c0_14], %26 {strides = array<i32>} : memref<32x128xbf16, #tpu.memory_space<vmem>>, vector<32x128xbf16>,
    %c0_15 = arith.constant 0 : index
    %c0_16 = arith.constant 0 : index
    %28 = vector.load %arg2[%c0_15, %c0_16] : memref<32x128xbf16, #tpu.memory_space<vmem>>, vector<32x128xbf16>
    %29 = arith.extf %28 : vector<32x128xbf16> to vector<32x128xf32>
    %30 = arith.subf %29, %25 : vector<32x128xf32>
    %31 = math.absf %30 : vector<32x128xf32>
    %32 = arith.mulf %31, %19 : vector<32x128xf32>
    %c0_17 = arith.constant 0 : index
    %c0_18 = arith.constant 0 : index
    %33 = vector.load %arg9[%c0_17, %c0_18] : memref<8x128xf32, #tpu.memory_space<vmem>>, vector<8x128xf32>
    %34 = vector.shape_cast %32 : vector<32x128xf32> to vector<4x8x128xf32>
    %cst_19 = arith.constant dense<0.000000e+00> : vector<8x128xf32>
    %35 = vector.multi_reduction <add>, %34, %cst_19 [0] : vector<4x8x128xf32> to vector<8x128xf32>
    %36 = arith.addf %33, %35 : vector<8x128xf32>
    %c0_20 = arith.constant 0 : index
    %c0_21 = arith.constant 0 : index
    %37 = vector.load %arg9[%c0_20, %c0_21] : memref<8x128xf32, #tpu.memory_space<vmem>>, vector<8x128xf32>
    tpu.vector_store %arg9[%c0_20, %c0_21], %36 {strides = array<i32>} : memref<8x128xf32, #tpu.memory_space<vmem>>, vector<8x128xf32>,
    return
  }
  func.func @transform_0(%arg0: i32, %arg1: i32) -> (i32, i32) {
    %c1_i32 = arith.constant 1 : i32
    %0 = arith.muli %arg0, %c1_i32 : i32
    %1 = arith.addi %0, %arg1 : i32
    %c0_i32 = arith.constant 0 : i32
    %c0_i32_0 = arith.constant 0 : i32
    return %1, %c0_i32 : i32, i32
  }
  func.func @transform_1(%arg0: i32, %arg1: i32) -> (i32, i32) {
    %c1_i32 = arith.constant 1 : i32
    %0 = arith.muli %arg0, %c1_i32 : i32
    %1 = arith.addi %0, %arg1 : i32
    %c0_i32 = arith.constant 0 : i32
    %c0_i32_0 = arith.constant 0 : i32
    return %1, %c0_i32 : i32, i32
  }
  func.func @transform_2(%arg0: i32, %arg1: i32) -> (i32, i32) {
    %c0_i32 = arith.constant 0 : i32
    %c0_i32_0 = arith.constant 0 : i32
    %c0_i32_1 = arith.constant 0 : i32
    return %c0_i32, %c0_i32_0 : i32, i32
  }
  func.func @transform_3(%arg0: i32, %arg1: i32) -> (i32, i32) {
    %c0_i32 = arith.constant 0 : i32
    %c0_i32_0 = arith.constant 0 : i32
    %c0_i32_1 = arith.constant 0 : i32
    return %c0_i32, %c0_i32_0 : i32, i32
  }
  func.func @transform_4(%arg0: i32, %arg1: i32) -> (i32, i32) {
    %c0_i32 = arith.constant 0 : i32
    %c0_i32_0 = arith.constant 0 : i32
    %c0_i32_1 = arith.constant 0 : i32
    return %c0_i32, %c0_i32_0 : i32, i32
  }
  func.func @transform_5(%arg0: i32, %arg1: i32) -> (i32, i32) {
    %c0_i32 = arith.constant 0 : i32
    %c0_i32_0 = arith.constant 0 : i32
    %c0_i32_1 = arith.constant 0 : i32
    return %c0_i32, %c0_i32_0 : i32, i32
  }
  func.func @transform_6(%arg0: i32, %arg1: i32) -> (i32, i32) {
    %c1_i32 = arith.constant 1 : i32
    %0 = arith.muli %arg0, %c1_i32 : i32
    %1 = arith.addi %0, %arg1 : i32
    %c0_i32 = arith.constant 0 : i32
    %c0_i32_0 = arith.constant 0 : i32
    return %1, %c0_i32 : i32, i32
  }
  func.func @transform_7(%arg0: i32, %arg1: i32) -> (i32, i32) {
    %c0_i32 = arith.constant 0 : i32
    %c0_i32_0 = arith.constant 0 : i32
    return %arg0, %c0_i32 : i32, i32
  }
}

</mosaic_0001>

<llo_original>
// kernel: simmim_forward.1
$region0: #{simmim_forward.1}
  #allocation0 [shape = 'u32[]', space=smem, size = 0x4, offset = 0x4, fixed_abs, tag = 'smem constant byte address 0x4 - core index']
  #allocation1 [shape = 'u32[144,128]{1,0:T(1,128)}', space=vmem, size = 0x12000, scoped, tag = 'internal scratch']
  %s0 = inlined_call_operand.vmem [shape: bf16[64,128], index: 0, kind: input, shape index: {}]
  %s1 = inlined_call_operand.vmem [shape: bf16[64,2], index: 1, kind: input, shape index: {}]
  %s2 = inlined_call_operand.vmem [shape: bf16[128,128], index: 2, kind: input, shape index: {}]
  %s3 = inlined_call_operand.vmem [shape: f32[1,128], index: 3, kind: input, shape index: {}]
  %s4 = inlined_call_operand.vmem [shape: f32[1,128], index: 4, kind: input, shape index: {}]
  %s5 = inlined_call_operand.vmem [shape: f32[1,128], index: 5, kind: input, shape index: {}]
  %s6 = inlined_call_operand.vmem [shape: bf16[64,128], index: 6, kind: output, shape index: {0}]
  %s7 = inlined_call_operand.vmem [shape: f32[16,128], index: 7, kind: output, shape index: {1}]
  %8 = xla_tuple %s6, %s7
  %s9 = sld [smem:[#allocation0]]
  $region69: #{simmim_forward.1} parent=0
    _
  %s11 = ssub.s32 1, %s9
  %s12 = scalar_select 0, %s11, %s9
  loop: start=0, step=1, limit=4
  $region2: #{simmim_forward.1} parent=0 // loop_pre_header
    _
  $region3: #{simmim_forward.1} parent=0 // loop_header
    %s14 = sphi 0, %s18
    %p15 = scmp.ge.s32.totalorder %s14, 4
    %s21 = sphi 0, %s33
    %s22 = sphi 0, %s29
    %s23 = sphi 0, %s21
    %s24 = sphi 0, %s22
    %s25 = sphi 0, %s23
    %s26 = sphi 0, %s24
    %s38 = sphi 0, %s40
    %s41 = sphi 0, %s38
    %s42 = sphi 0, %s41
    %s58 = sphi 0, %s42
    %s66 = sphi 0, %s68
    %s69 = sphi 0, %s66
    %s70 = sphi 0, %s69
    %s86 = sphi 0, %s70
    %s90 = sphi 0, %s90
    %s92 = sphi 0, %s90
    %s93 = sphi 0, %s92
    %s107 = sphi 0, %s93
    %s111 = sphi 0, %s111
    %s113 = sphi 0, %s111
    %s114 = sphi 0, %s113
    %s128 = sphi 0, %s114
    %s132 = sphi 0, %s132
    %s134 = sphi 0, %s132
    %s135 = sphi 0, %s134
    %s149 = sphi 0, %s135
    %s153 = sphi 0, %s153
    %s155 = sphi 0, %s153
    %s156 = sphi 0, %s155
    %s170 = sphi 0, %s156
    %s178 = sphi 0, %s180
    %s181 = sphi 0, %s178
    %s182 = sphi 0, %s181
    %s198 = sphi 0, %s182
    %s204 = sphi 0, %s206
    %s207 = sphi 0, %s204
    %s208 = sphi 0, %s207
    %s224 = sphi 0, %s208
  $region4: #{simmim_forward.1} parent=0 // loop_header_branch
    %17 = sbr.rel (%p15) target = $region8
  $region5: #{simmim_forward.1} parent=0 // loop_body
    %s19 = ssub.s32 %s14, 1
    %s20 = ssub.s32 %s14, 2
    %s27 = sadd.s32 1, %s22
    %p28 = scmp.ge.s32.totalorder %s27, 1
    %s29 = scalar_select %p28, 0, %s27
    %s30 = sadd.s32 1, %s21
    %s31 = scalar_select %p28, %s30, %s21
    %p32 = scmp.ge.s32.totalorder %s31, 2
    %s33 = scalar_select %p32, 0, %s31
    %s34 = sadd.s32 %s21, %s22
    %s35 = sadd.s32 %s33, %s29
    %s36 = ssub.s32 %s34, %s35
    %p37 = scmp.eq.s32.totalorder %s36, 0
    %s39 = sadd.s32 %s38, 1
    %s40 = scalar_select %p37, %s38, %s39
    %p43 = pneg %p37
    %p44 = scmp.eq.s32.totalorder %s14, 1
    %p45 = por %p43, %p44
    %p46 = scmp.ne.s32.totalorder %s38, %s41
    %p47 = scmp.eq.s32.totalorder %s14, 0
    %p48 = por %p46, %p47
    %p49 = scmp.ne.s32.totalorder %s38, %s41
    %p50 = scmp.eq.s32.totalorder %s19, 1
    %p51 = por %p49, %p50
    %p52 = scmp.ne.s32.totalorder %s41, %s42
    %p53 = scmp.eq.s32.totalorder %s19, 0
    %p54 = por %p52, %p53
    %p55 = scmp.ne.s32.totalorder %s41, %s42
    %p56 = scmp.eq.s32.totalorder %s20, 1
    %p57 = por %p55, %p56
    %p59 = scmp.ne.s32.totalorder %s42, %s58
    %p60 = scmp.eq.s32.totalorder %s20, 0
    %p61 = por %p59, %p60
    %s62 = sadd.s32 %s21, %s22
    %s63 = sadd.s32 %s33, %s29
    %s64 = ssub.s32 %s62, %s63
    %p65 = scmp.eq.s32.totalorder %s64, 0
    %s67 = sadd.s32 %s66, 1
    %s68 = scalar_select %p65, %s66, %s67
    %p71 = pneg %p65
    %p72 = scmp.eq.s32.totalorder %s14, 1
    %p73 = por %p71, %p72
    %p74 = scmp.ne.s32.totalorder %s66, %s69
    %p75 = scmp.eq.s32.totalorder %s14, 0
    %p76 = por %p74, %p75
    %p77 = scmp.ne.s32.totalorder %s66, %s69
    %p78 = scmp.eq.s32.totalorder %s19, 1
    %p79 = por %p77, %p78
    %p80 = scmp.ne.s32.totalorder %s69, %s70
    %p81 = scmp.eq.s32.totalorder %s19, 0
    %p82 = por %p80, %p81
    %p83 = scmp.ne.s32.totalorder %s69, %s70
    %p84 = scmp.eq.s32.totalorder %s20, 1
    %p85 = por %p83, %p84
    %p87 = scmp.ne.s32.totalorder %s70, %s86
    %p88 = scmp.eq.s32.totalorder %s20, 0
    %p89 = por %p87, %p88
    %s91 = sadd.s32 %s90, 1
    %p94 = scmp.eq.s32.totalorder %s14, 1
    %p95 = scmp.ne.s32.totalorder %s90, %s92
    %p96 = scmp.eq.s32.totalorder %s14, 0
    %p97 = por %p95, %p96
    %p98 = scmp.ne.s32.totalorder %s90, %s92
    %p99 = scmp.eq.s32.totalorder %s19, 1
    %p100 = por %p98, %p99
    %p101 = scmp.ne.s32.totalorder %s92, %s93
    %p102 = scmp.eq.s32.totalorder %s19, 0
    %p103 = por %p101, %p102
    %p104 = scmp.ne.s32.totalorder %s92, %s93
    %p105 = scmp.eq.s32.totalorder %s20, 1
    %p106 = por %p104, %p105
    %p108 = scmp.ne.s32.totalorder %s93, %s107
    %p109 = scmp.eq.s32.totalorder %s20, 0
    %p110 = por %p108, %p109
    %s112 = sadd.s32 %s111, 1
    %p115 = scmp.eq.s32.totalorder %s14, 1
    %p116 = scmp.ne.s32.totalorder %s111, %s113
    %p117 = scmp.eq.s32.totalorder %s14, 0
    %p118 = por %p116, %p117
    %p119 = scmp.ne.s32.totalorder %s111, %s113
    %p120 = scmp.eq.s32.totalorder %s19, 1
    %p121 = por %p119, %p120
    %p122 = scmp.ne.s32.totalorder %s113, %s114
    %p123 = scmp.eq.s32.totalorder %s19, 0
    %p124 = por %p122, %p123
    %p125 = scmp.ne.s32.totalorder %s113, %s114
    %p126 = scmp.eq.s32.totalorder %s20, 1
    %p127 = por %p125, %p126
    %p129 = scmp.ne.s32.totalorder %s114, %s128
    %p130 = scmp.eq.s32.totalorder %s20, 0
    %p131 = por %p129, %p130
    %s133 = sadd.s32 %s132, 1
    %p136 = scmp.eq.s32.totalorder %s14, 1
    %p137 = scmp.ne.s32.totalorder %s132, %s134
    %p138 = scmp.eq.s32.totalorder %s14, 0
    %p139 = por %p137, %p138
    %p140 = scmp.ne.s32.totalorder %s132, %s134
    %p141 = scmp.eq.s32.totalorder %s19, 1
    %p142 = por %p140, %p141
    %p143 = scmp.ne.s32.totalorder %s134, %s135
    %p144 = scmp.eq.s32.totalorder %s19, 0
    %p145 = por %p143, %p144
    %p146 = scmp.ne.s32.totalorder %s134, %s135
    %p147 = scmp.eq.s32.totalorder %s20, 1
    %p148 = por %p146, %p147
    %p150 = scmp.ne.s32.totalorder %s135, %s149
    %p151 = scmp.eq.s32.totalorder %s20, 0
    %p152 = por %p150, %p151
    %s154 = sadd.s32 %s153, 1
    %p157 = scmp.eq.s32.totalorder %s14, 1
    %p158 = scmp.ne.s32.totalorder %s153, %s155
    %p159 = scmp.eq.s32.totalorder %s14, 0
    %p160 = por %p158, %p159
    %p161 = scmp.ne.s32.totalorder %s153, %s155
    %p162 = scmp.eq.s32.totalorder %s19, 1
    %p163 = por %p161, %p162
    %p164 = scmp.ne.s32.totalorder %s155, %s156
    %p165 = scmp.eq.s32.totalorder %s19, 0
    %p166 = por %p164, %p165
    %p167 = scmp.ne.s32.totalorder %s155, %s156
    %p168 = scmp.eq.s32.totalorder %s20, 1
    %p169 = por %p167, %p168
    %p171 = scmp.ne.s32.totalorder %s156, %s170
    %p172 = scmp.eq.s32.totalorder %s20, 0
    %p173 = por %p171, %p172
    %s174 = sadd.s32 %s21, %s22
    %s175 = sadd.s32 %s33, %s29
    %s176 = ssub.s32 %s174, %s175
    %p177 = scmp.eq.s32.totalorder %s176, 0
    %s179 = sadd.s32 %s178, 1
    %s180 = scalar_select %p177, %s178, %s179
    %p183 = pneg %p177
    %p184 = scmp.eq.s32.totalorder %s14, 1
    %p185 = por %p183, %p184
    %p186 = scmp.ne.s32.totalorder %s178, %s181
    %p187 = scmp.eq.s32.totalorder %s14, 0
    %p188 = por %p186, %p187
    %p189 = scmp.ne.s32.totalorder %s178, %s181
    %p190 = scmp.eq.s32.totalorder %s19, 1
    %p191 = por %p189, %p190
    %p192 = scmp.ne.s32.totalorder %s181, %s182
    %p193 = scmp.eq.s32.totalorder %s19, 0
    %p194 = por %p192, %p193
    %p195 = scmp.ne.s32.totalorder %s181, %s182
    %p196 = scmp.eq.s32.totalorder %s20, 1
    %p197 = por %p195, %p196
    %p199 = scmp.ne.s32.totalorder %s182, %s198
    %p200 = scmp.eq.s32.totalorder %s20, 0
    %p201 = por %p199, %p200
    %s202 = ssub.s32 %s21, %s33
    %p203 = scmp.eq.s32.totalorder %s202, 0
    %s205 = sadd.s32 %s204, 1
    %s206 = scalar_select %p203, %s204, %s205
    %p209 = pneg %p203
    %p210 = scmp.eq.s32.totalorder %s14, 1
    %p211 = por %p209, %p210
    %p212 = scmp.ne.s32.totalorder %s204, %s207
    %p213 = scmp.eq.s32.totalorder %s14, 0
    %p214 = por %p212, %p213
    %p215 = scmp.ne.s32.totalorder %s204, %s207
    %p216 = scmp.eq.s32.totalorder %s19, 1
    %p217 = por %p215, %p216
    %p218 = scmp.ne.s32.totalorder %s207, %s208
    %p219 = scmp.eq.s32.totalorder %s19, 0
    %p220 = por %p218, %p219
    %p221 = scmp.ne.s32.totalorder %s207, %s208
    %p222 = scmp.eq.s32.totalorder %s20, 1
    %p223 = por %p221, %p222
    %p225 = scmp.ne.s32.totalorder %s208, %s224
    %p226 = scmp.eq.s32.totalorder %s20, 0
    %p227 = por %p225, %p226
    %p228 = scmp.le.s32.totalorder 1, %s14
    %p229 = scmp.lt.s32.totalorder %s14, 3
    %p230 = pnand %p228, %p229
    %p231 = pneg %p230
    // Predicated region
    $region9: #{simmim_forward.1} parent=5 // pred_check
      _
    $region10: #{simmim_forward.1} parent=5 // pred_check_branch
      %233 = sbr.rel (%p230) target = $region12
    $region11: #{simmim_forward.1} parent=5 // pred_region
      %s234 = ssub.s32 %s14, 1
      // Predicated region
      $region13: #{simmim_forward.1} parent=11 // pred_check
        %p235 = pneg %p103
      $region14: #{simmim_forward.1} parent=11 // pred_check_branch
        %237 = sbr.rel (%p235) target = $region16
      $region15: #{simmim_forward.1} parent=11 // pred_region
        _
      $region16: #{simmim_forward.1} parent=11 // pred_fallthru
        _
      // Predicated region
      $region17: #{simmim_forward.1} parent=11 // pred_check
        %p238 = pneg %p124
      $region18: #{simmim_forward.1} parent=11 // pred_check_branch
        %240 = sbr.rel (%p238) target = $region20
      $region19: #{simmim_forward.1} parent=11 // pred_region
        _
      $region20: #{simmim_forward.1} parent=11 // pred_fallthru
        _
      // Predicated region
      $region21: #{simmim_forward.1} parent=11 // pred_check
        %p241 = pneg %p145
      $region22: #{simmim_forward.1} parent=11 // pred_check_branch
        %243 = sbr.rel (%p241) target = $region24
      $region23: #{simmim_forward.1} parent=11 // pred_region
        _
      $region24: #{simmim_forward.1} parent=11 // pred_fallthru
        _
      // Predicated region
      $region25: #{simmim_forward.1} parent=11 // pred_check
        %p244 = pneg %p166
      $region26: #{simmim_forward.1} parent=11 // pred_check_branch
        %246 = sbr.rel (%p244) target = $region28
      $region27: #{simmim_forward.1} parent=11 // pred_region
        _
      $region28: #{simmim_forward.1} parent=11 // pred_fallthru
        _
    $region12: #{simmim_forward.1} parent=5 // pred_fallthru
      _
    %p247 = scmp.lt.s32.totalorder %s14, 2
    // Predicated region
    $region29: #{simmim_forward.1} parent=5 // pred_check
      %p248 = pneg %p247
    $region30: #{simmim_forward.1} parent=5 // pred_check_branch
      %250 = sbr.rel (%p248) target = $region32
    $region31: #{simmim_forward.1} parent=5 // pred_region
      // Predicated region
      $region33: #{simmim_forward.1} parent=31 // pred_check
        %p251 = pneg %p48
      $region34: #{simmim_forward.1} parent=31 // pred_check_branch
        %253 = sbr.rel (%p251) target = $region36
      $region35: #{simmim_forward.1} parent=31 // pred_region
        %s254 = sadd.s32 %s21, %s22
        %s255 = smul.u32 4, %s254
        %p256 = scmp.lt.s32.totalorder %s255, 7
        %s257 = scalar_select %p256, %s255, 7
        %s258 = smul.addr %s257, 4
        %s259 = scalar_lea.vmem %s0, %s258
        %s260 = sadd.s32 %s21, %s22
        %s261 = smul.u32 4, %s260
      $region36: #{simmim_forward.1} parent=31 // pred_fallthru
        _
      // Predicated region
      $region37: #{simmim_forward.1} parent=31 // pred_check
        %p262 = pneg %p76
      $region38: #{simmim_forward.1} parent=31 // pred_check_branch
        %264 = sbr.rel (%p262) target = $region40
      $region39: #{simmim_forward.1} parent=31 // pred_region
        %s265 = sadd.s32 %s21, %s22
        %s266 = smul.u32 4, %s265
        %p267 = scmp.lt.s32.totalorder %s266, 7
        %s268 = scalar_select %p267, %s266, 7
        %s269 = smul.addr %s268, 4
        %s270 = scalar_lea.vmem %s1, %s269
        %s271 = sadd.s32 %s21, %s22
        %s272 = smul.u32 4, %s271
      $region40: #{simmim_forward.1} parent=31 // pred_fallthru
        _
    $region32: #{simmim_forward.1} parent=5 // pred_fallthru
      _
    %p273 = scmp.le.s32.totalorder 1, %s14
    %p274 = scmp.lt.s32.totalorder %s14, 3
    %p275 = pnand %p273, %p274
    %p276 = pneg %p275
    // Predicated region
    $region41: #{simmim_forward.1} parent=5 // pred_check
      _
    $region42: #{simmim_forward.1} parent=5 // pred_check_branch
      %278 = sbr.rel (%p275) target = $region44
    $region43: #{simmim_forward.1} parent=5 // pred_region
      %s279 = ssub.s32 %s14, 1
      %s280 = sadd.s32 %s23, %s24
      %s281 = smul.u32 4, %s280
      %p282 = scmp.lt.s32.totalorder %s281, 7
      %s283 = scalar_select %p282, %s281, 7
      %s284 = smul.addr %s283, 4
      %s285 = scalar_lea.vmem %s0, %s284
      %p286 = pneg %p54
      %p287 = pneg %p51
      %s288 = sadd.s32 %s23, %s24
      %s289 = smul.u32 4, %s288
      %p290 = scmp.lt.s32.totalorder %s289, 7
      %s291 = scalar_select %p290, %s289, 7
      %s292 = smul.addr %s291, 4
      %s293 = scalar_lea.vmem %s1, %s292
      %p294 = pneg %p82
      %p295 = pneg %p79
      %p296 = pneg %p103
      %p297 = pneg %p100
      %p298 = pneg %p124
      %p299 = pneg %p121
      %p300 = pneg %p145
      %p301 = pneg %p142
      %p302 = pneg %p166
      %p303 = pneg %p163
      %p304 = pneg %p194
      %p305 = pneg %p191
      %s306 = sadd.s32 %s23, %s24
      %s307 = smul.u32 4, %s306
      %p308 = scmp.lt.s32.totalorder %s307, 7
      %s309 = scalar_select %p308, %s307, 7
      %s310 = smul.addr %s309, 4
      %s311 = scalar_lea.vmem %s6, %s310
      %p312 = pneg %p220
      %p313 = pneg %p217
      %p314 = scmp.lt.s32.totalorder %s23, 1
      %s315 = scalar_select %p314, %s23, 1
      %s316 = smul.addr %s315, 8
      %s317 = scalar_lea.vmem %s7, %s316
      %s318 = sadd.s32 %s23, %s24
      %s319 = smul.u32 4, %s318
      %p320 = scmp.lt.s32.totalorder %s319, 7
      %s321 = scalar_select %p320, %s319, 7
      %s322 = smul.addr %s321, 4
      %s323 = scalar_lea.vmem %s0, %s322
      %s324 = sadd.s32 %s23, %s24
      %s325 = smul.u32 4, %s324
      %s326 = sadd.s32 %s23, %s24
      %s327 = smul.u32 4, %s326
      %p328 = scmp.lt.s32.totalorder %s327, 7
      %s329 = scalar_select %p328, %s327, 7
      %s330 = smul.addr %s329, 4
      %s331 = scalar_lea.vmem %s1, %s330
      %s332 = sadd.s32 %s23, %s24
      %s333 = smul.u32 4, %s332
      %s334 = sadd.s32 %s23, %s24
      %s335 = smul.u32 4, %s334
      %p336 = scmp.lt.s32.totalorder %s335, 7
      %s337 = scalar_select %p336, %s335, 7
      %s338 = smul.addr %s337, 4
      %s339 = scalar_lea.vmem %s6, %s338
      %s340 = sadd.s32 %s23, %s24
      %s341 = smul.u32 4, %s340
      %p342 = scmp.lt.s32.totalorder %s23, 1
      %s343 = scalar_select %p342, %s23, 1
      %s344 = smul.addr %s343, 8
      %s345 = scalar_lea.vmem %s7, %s344
      %p347 = scmp.eq.s32.totalorder %s24, 0
      // Predicated region
      $region45: #{simmim_forward.1} parent=43 // pred_check
        %p348 = pneg %p347
      $region46: #{simmim_forward.1} parent=43 // pred_check_branch
        %350 = sbr.rel (%p348) target = $region48
      $region47: #{simmim_forward.1} parent=43 // pred_region
        %351 = vst [vmem:[%s345] sm:$0xff] 0.0
      $region48: #{simmim_forward.1} parent=43 // pred_fallthru
        _
      %v352 = vld [vmem:[%s323] sm:$0xf]
      %v353 = vld [vmem:[%s323 + $0x4] sm:$0xf]
      %v354 = vld [vmem:[%s323 + $0x8] sm:$0xf]
      %v355 = vld [vmem:[%s323 + $0xc] sm:$0xf]
      %v356 = vld [vmem:[%s2] sm:$0xf]
      %v357 = vld [vmem:[%s2 + $0x4] sm:$0xf]
      %v358 = vld [vmem:[%s2 + $0x8] sm:$0xf]
      %v359 = vld [vmem:[%s2 + $0xc] sm:$0xf]
      %v360 = vld [vmem:[%s2 + $0x10] sm:$0xf]
      %v361 = vld [vmem:[%s2 + $0x14] sm:$0xf]
      %v362 = vld [vmem:[%s2 + $0x18] sm:$0xf]
      %v363 = vld [vmem:[%s2 + $0x1c] sm:$0xf]
      %v364 = vld [vmem:[%s2 + $0x20] sm:$0xf]
      %v365 = vld [vmem:[%s2 + $0x24] sm:$0xf]
      %v366 = vld [vmem:[%s2 + $0x28] sm:$0xf]
      %v367 = vld [vmem:[%s2 + $0x2c] sm:$0xf]
      %v368 = vld [vmem:[%s2 + $0x30] sm:$0xf]
      %v369 = vld [vmem:[%s2 + $0x34] sm:$0xf]
      %v370 = vld [vmem:[%s2 + $0x38] sm:$0xf]
      %v371 = vld [vmem:[%s2 + $0x3c] sm:$0xf]
      %v372 = vld [vmem:[%s3] sm:$0x1]
      %v374 = vlaneseq
      %v375 = vshrl.u32 %v374, 7
      %v376 = vsub.s32 0, %v375
      %v377 = vrot.slane %v372, %v376
      %v383 = vunpack.c.l.b16 %v352
      %v384 = vunpack.c.l.b16 %v353
      %v385 = vunpack.c.l.b16 %v354
      %v386 = vunpack.c.l.b16 %v355
      %v387 = vpack.c.b16 %v384, %v383
      %v388 = vpack.c.b16 %v386, %v385
      %v407 = vunpack.c.l.b16 %v356
      %v408 = vunpack.c.l.b16 %v357
      %v409 = vunpack.c.l.b16 %v358
      %v410 = vunpack.c.l.b16 %v359
      %v411 = vunpack.c.l.b16 %v360
      %v412 = vunpack.c.l.b16 %v361
      %v413 = vunpack.c.l.b16 %v362
      %v414 = vunpack.c.l.b16 %v363
      %v415 = vunpack.c.l.b16 %v364
      %v416 = vunpack.c.l.b16 %v365
      %v417 = vunpack.c.l.b16 %v366
      %v418 = vunpack.c.l.b16 %v367
      %v419 = vunpack.c.l.b16 %v368
      %v420 = vunpack.c.l.b16 %v369
      %v421 = vunpack.c.l.b16 %v370
      %v422 = vunpack.c.l.b16 %v371
      %v423 = vpack.c.b16 %v408, %v407
      %v424 = vpack.c.b16 %v410, %v409
      %v425 = vpack.c.b16 %v412, %v411
      %v426 = vpack.c.b16 %v414, %v413
      %v427 = vpack.c.b16 %v416, %v415
      %v428 = vpack.c.b16 %v418, %v417
      %v429 = vpack.c.b16 %v420, %v419
      %v430 = vpack.c.b16 %v422, %v421
      %439 = vmatprep.subr.bf16.mxu0 0
      %440 = vmatpush1.bf16.msra.mxu0 %v423
      %441 = vmatprep.subr.bf16.mxu0 0
      %442 = vmatpush1.bf16.msra.mxu0 %v424
      %443 = vmatprep.subr.bf16.mxu0 0
      %444 = vmatpush1.bf16.msra.mxu0 %v425
      %445 = vmatprep.subr.bf16.mxu0 0
      %446 = vmatpush1.bf16.msra.mxu0 %v426
      %447 = vmatprep.subr.bf16.mxu0 0
      %448 = vmatpush1.bf16.msra.mxu0 %v427
      %449 = vmatprep.subr.bf16.mxu0 0
      %450 = vmatpush1.bf16.msra.mxu0 %v428
      %451 = vmatprep.subr.bf16.mxu0 0
      %452 = vmatpush1.bf16.msra.mxu0 %v429
      %453 = vmatprep.subr.bf16.mxu0 0
      %454 = vmatpush1.bf16.msra.mxu0 %v430
      %455 = vmatprep.subr.bf16.mxu0 0
      %456 = vmatpush1.bf16.msra.mxu0 0
      %457 = vmatprep.subr.bf16.mxu0 0
      %458 = vmatpush1.bf16.msra.mxu0 0
      %459 = vmatprep.subr.bf16.mxu0 0
      %460 = vmatpush1.bf16.msra.mxu0 0
      %461 = vmatprep.subr.bf16.mxu0 0
      %462 = vmatpush1.bf16.msra.mxu0 0
      %463 = vmatprep.subr.bf16.mxu0 0
      %464 = vmatpush1.bf16.msra.mxu0 0
      %465 = vmatprep.subr.bf16.mxu0 0
      %466 = vmatpush1.bf16.msra.mxu0 0
      %467 = vmatprep.subr.bf16.mxu0 0
      %468 = vmatpush1.bf16.msra.mxu0 0
      %469 = vmatprep.subr.bf16.mxu0 0
      %470 = vmatpush1.bf16.msra.mxu0 0
      %471 = vmatprep.mubr.bf16.mxu0 0
      %472 = vmatmul.mubr.bf16.gmra.mrb[0].mxu0 %v387
      %v473 = vpop.f32.mrb[0].mxu0
      %v474 = vadd.f32 %v377, %v473
      %v475 = vpop.f32.mrb[0].mxu0
      %v476 = vpop.f32.mrb[0].mxu0
      %v477 = vadd.f32 %v377, %v476
      %v478 = vpop.f32.mrb[0].mxu0
      %479 = vmatprep.mubr.bf16.mxu0 0
      %480 = vmatmul.mubr.bf16.gmra.mrb[0].mxu0 %v388
      %v481 = vpop.f32.mrb[0].mxu0
      %v482 = vadd.f32 %v377, %v481
      %v483 = vpop.f32.mrb[0].mxu0
      %v484 = vpop.f32.mrb[0].mxu0
      %v485 = vadd.f32 %v377, %v484
      %v486 = vpop.f32.mrb[0].mxu0
      %487 = vdwg.mxu0
      %v488 = vld [vmem:[%s331] sm:$0xf]
      %v489 = vld [vmem:[%s331 + $0x4] sm:$0xf]
      %v490 = vld [vmem:[%s331 + $0x8] sm:$0xf]
      %v491 = vld [vmem:[%s331 + $0xc] sm:$0xf]
      %v492 = vunpack.c.l.bf16 %v488
      %v493 = vunpack.c.l.bf16 %v489
      %v494 = vunpack.c.l.bf16 %v490
      %v495 = vunpack.c.l.bf16 %v491
      %500 = vrot.lane.b32.xlu0 %v492, 1
      %v501 = vpop.permute.xlu0 %500
      %502 = vrot.lane.b32.xlu0 %v493, 1
      %v503 = vpop.permute.xlu0 %502
      %504 = vrot.lane.b32.xlu0 %v494, 1
      %v505 = vpop.permute.xlu0 %504
      %506 = vrot.lane.b32.xlu0 %v495, 1
      %v507 = vpop.permute.xlu0 %506
      %v512 = vsub.f32 %v492, %v501
      %v513 = vsub.f32 %v493, %v503
      %v514 = vsub.f32 %v494, %v505
      %v515 = vsub.f32 %v495, %v507
      %v516 = vld [vmem:[%s5] sm:$0x1]
      %518 = vset.pattern.permute.xlu0 1
      %519 = vperm.xlu0 %518, %v512
      %v520 = vpop.permute.xlu0 %519
      %523 = vset.pattern.permute.xlu0 1
      %524 = vperm.xlu0 %523, %v513
      %v525 = vpop.permute.xlu0 %524
      %528 = vset.pattern.permute.xlu0 1
      %529 = vperm.xlu0 %528, %v514
      %v530 = vpop.permute.xlu0 %529
      %533 = vset.pattern.permute.xlu0 1
      %534 = vperm.xlu0 %533, %v515
      %v535 = vpop.permute.xlu0 %534
      %v538 = vlaneseq
      %v539 = vshrl.u32 %v538, 7
      %v540 = vsub.s32 0, %v539
      %v541 = vrot.slane %v516, %v540
      %v543 = vmul.f32 %v520, %v541
      %v544 = vmul.f32 %v525, %v541
      %v545 = vmul.f32 %v530, %v541
      %v546 = vmul.f32 %v535, %v541
      %547 = vset.pattern.permute.xlu0 0
      %548 = vperm.xlu0 %547, %v492
      %v549 = vpop.permute.xlu0 %548
      %551 = vset.pattern.permute.xlu0 0
      %552 = vperm.xlu0 %551, %v493
      %v553 = vpop.permute.xlu0 %552
      %555 = vset.pattern.permute.xlu0 0
      %556 = vperm.xlu0 %555, %v494
      %v557 = vpop.permute.xlu0 %556
      %559 = vset.pattern.permute.xlu0 0
      %560 = vperm.xlu0 %559, %v495
      %v561 = vpop.permute.xlu0 %560
      %v563 = vadd.f32 %v549, %v543
      %v564 = vadd.f32 %v553, %v544
      %v565 = vadd.f32 %v557, %v545
      %v566 = vadd.f32 %v561, %v546
      %vm567 = vcmp.gt.f32.partialorder %v563, 0.0
      %vm568 = vcmp.gt.f32.partialorder %v564, 0.0
      %vm569 = vcmp.gt.f32.partialorder %v565, 0.0
      %vm570 = vcmp.gt.f32.partialorder %v566, 0.0
      %v571 = vld [vmem:[%s4] sm:$0x1]
      %v573 = vlaneseq
      %v574 = vshrl.u32 %v573, 7
      %v575 = vsub.s32 0, %v574
      %v576 = vrot.slane %v571, %v575
      %v578 = vsel %vm567, %v576, %v474
      %v579 = vsel %vm568, %v576, %v477
      %v580 = vsel %vm569, %v576, %v482
      %v581 = vsel %vm570, %v576, %v485
      %v582 = vpack.c.bf16 %v579, %v578
      %v583 = vpack.c.bf16 %v581, %v580
      %v586 = vunpack.c.l.b16 %v582
      %v587 = vunpack.c.h.b16 %v582
      %v588 = vunpack.c.l.b16 %v583
      %v589 = vunpack.c.h.b16 %v583
      %v590 = vpack.c.b16 %v586, %v586
      %v591 = vpack.c.b16 %v587, %v587
      %v592 = vpack.c.b16 %v588, %v588
      %v593 = vpack.c.b16 %v589, %v589
      %598 = vst [vmem:[%s339] sm:$0xf] %v590
      %599 = vst [vmem:[%s339 + $0x4] sm:$0xf] %v591
      %600 = vst [vmem:[%s339 + $0x8] sm:$0xf] %v592
      %601 = vst [vmem:[%s339 + $0xc] sm:$0xf] %v593
      %v602 = vld [vmem:[%s323] sm:$0xf]
      %v603 = vld [vmem:[%s323 + $0x4] sm:$0xf]
      %v604 = vld [vmem:[%s323 + $0x8] sm:$0xf]
      %v605 = vld [vmem:[%s323 + $0xc] sm:$0xf]
      %v606 = vunpack.c.l.bf16 %v602
      %v607 = vunpack.c.l.bf16 %v603
      %v608 = vunpack.c.l.bf16 %v604
      %v609 = vunpack.c.l.bf16 %v605
      %v610 = vsub.f32 %v606, %v578
      %v611 = vsub.f32 %v607, %v579
      %v612 = vsub.f32 %v608, %v580
      %v613 = vsub.f32 %v609, %v581
      %v614 = vand.u32 2147483647, %v610
      %v615 = vand.u32 2147483647, %v611
      %v616 = vand.u32 2147483647, %v612
      %v617 = vand.u32 2147483647, %v613
      %v618 = vmul.f32 %v614, %v563
      %v619 = vmul.f32 %v615, %v564
      %v620 = vmul.f32 %v616, %v565
      %v621 = vmul.f32 %v617, %v566
      %v622 = vld [vmem:[%s345] sm:$0xff]
      %v623 = vadd.f32 %v618, %v619
      %v624 = vadd.f32 %v623, %v620
      %v625 = vadd.f32 %v624, %v621
      %v626 = vadd.f32 %v622, %v625
      %627 = vst [vmem:[%s345] sm:$0xff] %v626
      %s628 = sadd.s32 %s23, %s24
      %s629 = smul.u32 4, %s628
      %p630 = scmp.lt.s32.totalorder %s629, 7
      %s631 = scalar_select %p630, %s629, 7
      %s632 = smul.addr %s631, 4
      %s633 = scalar_lea.vmem %s6, %s632
      %p634 = scmp.lt.s32.totalorder %s23, 1
      %s635 = scalar_select %p634, %s23, 1
      %s636 = smul.addr %s635, 8
      %s637 = scalar_lea.vmem %s7, %s636
      // Predicated region
      $region49: #{simmim_forward.1} parent=43 // pred_check
        %p638 = pneg %p191
      $region50: #{simmim_forward.1} parent=43 // pred_check_branch
        %640 = sbr.rel (%p638) target = $region52
      $region51: #{simmim_forward.1} parent=43 // pred_region
        %s641 = sadd.s32 %s23, %s24
        %s642 = smul.u32 4, %s641
      $region52: #{simmim_forward.1} parent=43 // pred_fallthru
        _
      // Predicated region
      $region53: #{simmim_forward.1} parent=43 // pred_check
        %p643 = pneg %p217
      $region54: #{simmim_forward.1} parent=43 // pred_check_branch
        %645 = sbr.rel (%p643) target = $region56
      $region55: #{simmim_forward.1} parent=43 // pred_region
        _
      $region56: #{simmim_forward.1} parent=43 // pred_fallthru
        _
    $region44: #{simmim_forward.1} parent=5 // pred_fallthru
      _
    %p646 = scmp.le.s32.totalorder 2, %s14
    // Predicated region
    $region57: #{simmim_forward.1} parent=5 // pred_check
      %p647 = pneg %p646
    $region58: #{simmim_forward.1} parent=5 // pred_check_branch
      %649 = sbr.rel (%p647) target = $region60
    $region59: #{simmim_forward.1} parent=5 // pred_region
      %s650 = ssub.s32 %s14, 2
      // Predicated region
      $region61: #{simmim_forward.1} parent=59 // pred_check
        %p651 = pneg %p197
      $region62: #{simmim_forward.1} parent=59 // pred_check_branch
        %653 = sbr.rel (%p651) target = $region64
      $region63: #{simmim_forward.1} parent=59 // pred_region
        %s654 = sadd.s32 %s25, %s26
        %s655 = smul.u32 4, %s654
        %p656 = scmp.lt.s32.totalorder %s655, 7
        %s657 = scalar_select %p656, %s655, 7
        %s658 = smul.addr %s657, 4
        %s659 = scalar_lea.vmem %s6, %s658
      $region64: #{simmim_forward.1} parent=59 // pred_fallthru
        _
      // Predicated region
      $region65: #{simmim_forward.1} parent=59 // pred_check
        %p660 = pneg %p223
      $region66: #{simmim_forward.1} parent=59 // pred_check_branch
        %662 = sbr.rel (%p660) target = $region68
      $region67: #{simmim_forward.1} parent=59 // pred_region
        %p663 = scmp.lt.s32.totalorder %s25, 1
        %s664 = scalar_select %p663, %s25, 1
        %s665 = smul.addr %s664, 8
        %s666 = scalar_lea.vmem %s7, %s665
      $region68: #{simmim_forward.1} parent=59 // pred_fallthru
        _
    $region60: #{simmim_forward.1} parent=5 // pred_fallthru
      _
  $region6: #{simmim_forward.1} parent=0 // loop_footer
    %s18 = sadd.s32 1, %s14
  $region7: #{simmim_forward.1} parent=0 // loop_footer_branch
    %13 = sbr.rel target = $region3
  $region8: #{simmim_forward.1} parent=0 // loop_exit
    _

</llo_original>
